<compile_context>
chip_gen: v7x
topology: tpu7x:2x2x1
jax: 0.10.0
libtpu: 0.0.40
codegen_flags: <defaults>
</compile_context>

<pallas_src>
import jax
import jax.numpy as jnp
from jax.experimental import pallas as pl
from jax.experimental.pallas import tpu as pltpu


def _bn_kernel(x_ref, p_ref, o_ref):
    # y = x * scale + shift ; per-row params broadcast across the lane axis.
    x = x_ref[...].astype(jnp.float32)        # (block_rows, block_hw)
    p = p_ref[...]                            # (block_rows, 2) f32
    scale = p[:, 0:1]                         # (block_rows, 1)
    shift = p[:, 1:2]
    o_ref[...] = (x * scale + shift).astype(o_ref.dtype)


def _round_down8(v):
    return max(8, (v // 8) * 8)


def batchnorm2d(x, weight, bias, running_mean, running_var, eps=1e-5):
    """Inference BatchNorm2d on an NCHW tensor via a Pallas TPU kernel."""
    N, C, H, W = x.shape
    HW = H * W
    rows = N * C
    itemsize = jnp.dtype(x.dtype).itemsize

    # --- JAX glue: fuse the 4 per-channel params into one (rows, 2) array ---
    inv_std = jax.lax.rsqrt(running_var.astype(jnp.float32) + jnp.float32(eps))
    scale_c = weight.astype(jnp.float32) * inv_std                       # (C,)
    shift_c = bias.astype(jnp.float32) - running_mean.astype(jnp.float32) * scale_c
    params = jnp.stack([jnp.tile(scale_c, (N,)),                         # (rows, 2)
                        jnp.tile(shift_c, (N,))], axis=-1)

    # View NCHW as a 2-D slab (rows, HW); keep native dtype for HBM I/O.
    x2 = x.reshape(rows, HW)

    # --- Tiling ---
    TILE_BUDGET = 4 * 1024 * 1024   # ~4 MiB per buffer (fits v7x/v6e/v5e)
    MIN_ROW_BLOCK = 8
    row_bytes = max(1, HW * itemsize)

    if MIN_ROW_BLOCK * row_bytes <= TILE_BUDGET:
        # Common case: full-HW lane blocks -> contiguous DMAs, unmasked stores.
        block_hw = HW
        block_rows = min(rows, _round_down8(TILE_BUDGET // row_bytes))
        if rows >= 2 * MIN_ROW_BLOCK:
            # Guarantee >= 2 row blocks so both v7x TensorCores get work.
            half = ((rows + 1) // 2 + 7) // 8 * 8
            block_rows = min(block_rows, half)
    else:
        # Very large spatial maps: split lanes (128-aligned), lane axis innermost.
        block_rows = rows if rows < MIN_ROW_BLOCK else MIN_ROW_BLOCK
        block_hw = min(HW, max(128,
                               (TILE_BUDGET // (block_rows * itemsize)) // 128 * 128))

    grid = (pl.cdiv(rows, block_rows), pl.cdiv(HW, block_hw))

    x_spec = pl.BlockSpec((block_rows, block_hw), lambda i, j: (i, j))
    p_spec = pl.BlockSpec((block_rows, 2), lambda i, j: (i, 0))

    cost = pl.CostEstimate(
        flops=2 * rows * HW,
        transcendentals=0,
        bytes_accessed=2 * rows * HW * itemsize + params.size * 4,
    )

    out2 = pl.pallas_call(
        _bn_kernel,
        out_shape=jax.ShapeDtypeStruct((rows, HW), x.dtype),
        grid_spec=pltpu.PrefetchScalarGridSpec(
            num_scalar_prefetch=0,
            grid=grid,
            in_specs=[x_spec, p_spec],
            out_specs=x_spec,
        ),
        compiler_params=pltpu.CompilerParams(
            dimension_semantics=("parallel", "parallel"),
            vmem_limit_bytes=48 << 20,
        ),
        cost_estimate=cost,
    )(x2, params)

    return out2.reshape(N, C, H, W)


if __name__ == "__main__":
    def ref_bn(x, w, b, m, v, eps):
        bc = lambda p: p[None, :, None, None]
        return (x - bc(m)) * jax.lax.rsqrt(bc(v) + eps) * bc(w) + bc(b)

    eps = 1e-5
    key = jax.random.PRNGKey(0)

    # --- Primary small shape: NCHW = (2, 4, 16, 16) ---
    N, C, H, W = 2, 4, 16, 16
    kx, kw, kb, km, kv, key = jax.random.split(key, 6)
    x = jax.random.normal(kx, (N, C, H, W), dtype=jnp.float32)
    # (The reference module inits params to zero, which gives a trivially-zero
    # output; use non-trivial values so the math is exercised.)
    w = jax.random.normal(kw, (C,), dtype=jnp.float32)
    b = jax.random.normal(kb, (C,), dtype=jnp.float32)
    m = jax.random.normal(km, (C,), dtype=jnp.float32)
    v = jnp.abs(jax.random.normal(kv, (C,), dtype=jnp.float32)) + 0.5

    y = jax.block_until_ready(batchnorm2d(x, w, b, m, v, eps))
    y_ref = ref_bn(x, w, b, m, v, eps)
    assert y.shape == x.shape and y.dtype == x.dtype
    assert jnp.allclose(y, y_ref, atol=1e-5, rtol=1e-5), "mismatch (primary)"

    # --- Secondary: odd spatial size (7x7) and rows>=16 exercises the
    #     full-HW lane block + forced 2-way row split (megacore path). ---
    N2, C2, H2, W2 = 2, 16, 7, 7
    kx2, kw2, kb2, km2, kv2, key = jax.random.split(key, 6)
    x2 = jax.random.normal(kx2, (N2, C2, H2, W2), dtype=jnp.float32)
    w2 = jax.random.normal(kw2, (C2,), dtype=jnp.float32)
    b2 = jax.random.normal(kb2, (C2,), dtype=jnp.float32)
    m2 = jax.random.normal(km2, (C2,), dtype=jnp.float32)
    v2 = jnp.abs(jax.random.normal(kv2, (C2,), dtype=jnp.float32)) + 0.5

    y2 = jax.block_until_ready(batchnorm2d(x2, w2, b2, m2, v2, eps))
    y2_ref = ref_bn(x2, w2, b2, m2, v2, eps)
    assert jnp.allclose(y2, y2_ref, atol=1e-5, rtol=1e-5), "mismatch (secondary)"

    print("KERNEL_OK")
</pallas_src>

<mosaic_0001>
module attributes {stable_mosaic.version = 11 : i64} {
  func.func @_bn_kernel(%arg0: i32, %arg1: i32, %arg2: memref<8x256xf32, #tpu.memory_space<vmem>>, %arg3: memref<8x2xf32, #tpu.memory_space<vmem>>, %arg4: memref<8x256xf32, #tpu.memory_space<vmem>>) attributes {dimension_semantics = [#tpu.dimension_semantics<parallel>, #tpu.dimension_semantics<parallel>], iteration_bounds = array<i64: 1, 1>, scalar_prefetch = 0 : i64, scratch_operands = 0 : i64, tpu.core_type = #tpu.core_type<tc>, window_params = [{transform_indices = @transform_0, window_bounds = array<i64: 8, 256>}, {transform_indices = @transform_1, window_bounds = array<i64: 8, 2>}, {transform_indices = @transform_2, window_bounds = array<i64: 8, 256>}]} {
    %c0 = arith.constant 0 : index
    %c0_0 = arith.constant 0 : index
    %0 = vector.load %arg2[%c0, %c0_0] : memref<8x256xf32, #tpu.memory_space<vmem>>, vector<8x256xf32>
    %c0_1 = arith.constant 0 : index
    %c0_2 = arith.constant 0 : index
    %1 = vector.load %arg3[%c0_1, %c0_2] : memref<8x2xf32, #tpu.memory_space<vmem>>, vector<8x2xf32>
    %2 = vector.extract_strided_slice %1 {offsets = [0, 0], sizes = [8, 1], strides = [1, 1]} : vector<8x2xf32> to vector<8x1xf32>
    %3 = vector.extract_strided_slice %1 {offsets = [0, 1], sizes = [8, 1], strides = [1, 1]} : vector<8x2xf32> to vector<8x1xf32>
    %4 = vector.broadcast %2 : vector<8x1xf32> to vector<8x256xf32>
    %5 = arith.mulf %0, %4 : vector<8x256xf32>
    %6 = vector.broadcast %3 : vector<8x1xf32> to vector<8x256xf32>
    %7 = arith.addf %5, %6 : vector<8x256xf32>
    %c0_3 = arith.constant 0 : index
    %c0_4 = arith.constant 0 : index
    %8 = vector.load %arg4[%c0_3, %c0_4] : memref<8x256xf32, #tpu.memory_space<vmem>>, vector<8x256xf32>
    tpu.vector_store %arg4[%c0_3, %c0_4], %7 {strides = array<i32>} : memref<8x256xf32, #tpu.memory_space<vmem>>, vector<8x256xf32>,
    return
  }
  func.func @transform_0(%arg0: i32, %arg1: i32) -> (i32, i32) {
    %c0_i32 = arith.constant 0 : i32
    return %arg0, %arg1 : i32, i32
  }
  func.func @transform_1(%arg0: i32, %arg1: i32) -> (i32, i32) {
    %c0_i32 = arith.constant 0 : i32
    %c0_i32_0 = arith.constant 0 : i32
    return %arg0, %c0_i32 : i32, i32
  }
  func.func @transform_2(%arg0: i32, %arg1: i32) -> (i32, i32) {
    %c0_i32 = arith.constant 0 : i32
    return %arg0, %arg1 : i32, i32
  }
}

</mosaic_0001>

<llo_original>
// kernel: tpu_custom_call.1
$region0: #{tpu_custom_call.1}
  #allocation0 [shape = 'u32[]', space=smem, size = 0x4, offset = 0x4, fixed_abs, tag = 'smem constant byte address 0x4 - core index']
  #allocation1 [shape = 'u32[144,128]{1,0:T(1,128)}', space=vmem, size = 0x12000, scoped, tag = 'internal scratch']
  %s0 = inlined_call_operand.hbm [shape: f32[8,256], index: 0, kind: input, shape index: {}]
  %s1 = inlined_call_operand.vmem [shape: f32[8,2], index: 1, kind: input, shape index: {}]
  %s2 = inlined_call_operand.hbm [shape: f32[8,256], index: 2, kind: output, shape index: {}]
  %s3 = sld [smem:[#allocation0]]
  $region22: #{tpu_custom_call.1} parent=0
    _
  %s5 = ssub.s32 1, %s3
  %s6 = scalar_select 0, %s5, %s3
  $region1: #{tpu_custom_call.1} parent=0
    #allocation2 [shape = 'u8[8192]{0}', space=vmem, size = 0x2000, scoped, tag = 'input window, operand 0, single buffered']
    #allocation3 [shape = 's32[1]{0}', space=sflag, size = 0x4, scoped, tag = 'scoped memory for tpu_custom_call.1']
    #allocation4 [shape = 's32[1]{0}', space=sflag, size = 0x4, scoped, tag = 'scoped memory for tpu_custom_call.1']
    #allocation5 [shape = 'u8[8192]{0}', space=vmem, size = 0x2000, scoped, tag = 'output window, operand 0, single buffered']
    %7 = vsyncpa [#allocation3], 0
    %8 = vsyncpa [#allocation4], 0
    // Predicated region
    $region2: #{tpu_custom_call.1} parent=1 // pred_check
      _
    $region3: #{tpu_custom_call.1} parent=1 // pred_check_branch
      %10 = sbr.rel (0) target = $region5
    $region4: #{tpu_custom_call.1} parent=1 // pred_region
      %s12 = ssub.s32 256, 256
      %13 = vsyncadd [#allocation3], %s12
      %s15 = sshll.u32 [#allocation2], 4
      %s16 = int_to_ptr.vmem [resolvable:$true] %s15
      %18 = dma.hbm_to_vmem [thread:$0]  %s0, 256, %s16, [#allocation3]
    $region5: #{tpu_custom_call.1} parent=1 // pred_fallthru
      _
    // Predicated region
    $region6: #{tpu_custom_call.1} parent=1 // pred_check
      _
    $region7: #{tpu_custom_call.1} parent=1 // pred_check_branch
      %20 = sbr.rel (0) target = $region9
    $region8: #{tpu_custom_call.1} parent=1 // pred_region
      _
    $region9: #{tpu_custom_call.1} parent=1 // pred_fallthru
      _
    // Predicated region
    $region10: #{tpu_custom_call.1} parent=1 // pred_check
      _
    $region11: #{tpu_custom_call.1} parent=1 // pred_check_branch
      %22 = sbr.rel (0) target = $region13
    $region12: #{tpu_custom_call.1} parent=1 // pred_region
      %23 = dma.done [#allocation3], 256
    $region13: #{tpu_custom_call.1} parent=1 // pred_fallthru
      _
    %v24 = vld [vmem:[#allocation2] sm:$0xff]
    %v25 = vld [vmem:[#allocation2 + $0x8] sm:$0xff]
    %v26 = vld [vmem:[%s1] sm:$0xff]
    %28 = vset.pattern.permute.xlu0 0
    %29 = vperm.xlu0 %28, %v26
    %v30 = vpop.permute.xlu0 %29
    %v32 = vmul.f32 %v24, %v30
    %v33 = vmul.f32 %v25, %v30
    %34 = vset.pattern.permute.xlu0 1
    %35 = vperm.xlu0 %34, %v26
    %v36 = vpop.permute.xlu0 %35
    %v38 = vadd.f32 %v32, %v36
    %v39 = vadd.f32 %v33, %v36
    %40 = vst [vmem:[#allocation5] sm:$0xff] %v38
    %41 = vst [vmem:[#allocation5 + $0x8] sm:$0xff] %v39
    // Predicated region
    $region14: #{tpu_custom_call.1} parent=1 // pred_check
      _
    $region15: #{tpu_custom_call.1} parent=1 // pred_check_branch
      %43 = sbr.rel (0) target = $region17
    $region16: #{tpu_custom_call.1} parent=1 // pred_region
      %s45 = ssub.s32 256, 256
      %46 = vsyncadd [#allocation4], %s45
      %s48 = sshll.u32 [#allocation5], 4
      %s49 = int_to_ptr.vmem [resolvable:$true] %s48
      %51 = dma.vmem_to_hbm [thread:$0]  %s49, 256, %s2, [#allocation4]
    $region17: #{tpu_custom_call.1} parent=1 // pred_fallthru
      _
    // Predicated region
    $region18: #{tpu_custom_call.1} parent=1 // pred_check
      _
    $region19: #{tpu_custom_call.1} parent=1 // pred_check_branch
      %53 = sbr.rel (0) target = $region21
    $region20: #{tpu_custom_call.1} parent=1 // pred_region
      %54 = dma.done [#allocation4], 256
    $region21: #{tpu_custom_call.1} parent=1 // pred_fallthru
      _
    %55 = vsyncpa [#allocation3], 1
    %56 = vsyncpa [#allocation4], 1

</llo_original>
